<compile_context>
chip_gen: v7x
topology: tpu7x:2x2x1
jax: 0.10.0
libtpu: 0.0.40
codegen_flags: <defaults>
</compile_context>

<pallas_src>
import functools

import jax
import jax.numpy as jnp
from jax import lax
from jax.experimental import pallas as pl
from jax.experimental.pallas import tpu as pltpu

# Module defaults: reduction='mean', ignore_index=255, weight=None (unused).
IGNORE_INDEX = 255

_LANES = 128
_SUBLANES = 32            # block-row alignment valid for 1-, 2- and 4-byte dtypes
_ACC_ROWS = 32            # tiny per-core accumulator height (4 f32 vregs)
_DEFAULT_NUM_CORES = 2    # safe fallback: serial (harmless) on 1-TC chips


@functools.lru_cache(maxsize=None)
def _num_tensorcores(default: int = _DEFAULT_NUM_CORES) -> int:
    """TensorCores to split the reduction across: 2 on dual-TC parts (v7x/v5p),
    1 elsewhere.  Best-effort hardware query; falling back to 2 is always
    correct (the extra core axis just runs serially on 1-TC chips)."""
    try:
        info = pltpu.get_tpu_info()
    except Exception:
        return default
    for attr in ("num_cores", "core_count", "num_tensorcores",
                 "tensorcores_per_chip", "cores_per_chip"):
        val = getattr(info, attr, None)
        if val is None:
            continue
        try:
            nc = int(val)
        except (TypeError, ValueError):
            continue
        if nc >= 1:
            return min(nc, 2)
    return default


def _make_bce_kernel(block_rows: int, valid_rows: int):
    """valid_rows = number of real (DMA-backed) rows of the (rows, 128) slab."""

    def kernel(preds_ref, targets_ref, loss_out_ref, cnt_out_ref,
               loss_acc, cnt_acc):
        c = pl.program_id(0)                 # core-split axis  ("parallel")
        i = pl.program_id(1)                 # row-tile walk    ("arbitrary")
        tiles_per_core = pl.num_programs(1)

        @pl.when(i == 0)
        def _():
            loss_acc[...] = jnp.zeros_like(loss_acc)
            cnt_acc[...] = jnp.zeros_like(cnt_acc)

        base_row = (c * tiles_per_core + i) * block_rows

        def accumulate(row_mask):
            x = preds_ref[...].astype(jnp.float32)
            t = targets_ref[...].astype(jnp.float32)
            valid = t != jnp.float32(IGNORE_INDEX)
            if row_mask is not None:
                valid = jnp.logical_and(valid, row_mask)
            # Numerically-stable binary_cross_entropy_with_logits (PyTorch form).
            bce = jnp.maximum(x, 0.0) - x * t + jnp.log1p(jnp.exp(-jnp.abs(x)))
            # True select (NOT a multiply): boundary tiles may hold garbage
            # logits whose bce is NaN/Inf and must be dropped, not scaled.
            masked = jnp.where(valid, bce, 0.0)
            cnt = valid.astype(jnp.float32)
            # Reduce (block_rows,128) -> (_ACC_ROWS,128) with pure vreg-to-vreg
            # VALU adds; only the tiny accumulator is loaded/stored per tile,
            # so the hot loop has no VMEM scratch traffic competing for the
            # narrow vst slot.
            loss_acc[...] += jnp.sum(
                masked.reshape(-1, _ACC_ROWS, _LANES), axis=0)
            cnt_acc[...] += jnp.sum(
                cnt.reshape(-1, _ACC_ROWS, _LANES), axis=0)

        tile_fully_in_bounds = base_row + block_rows <= valid_rows

        @pl.when(tile_fully_in_bounds)
        def _():
            accumulate(None)                 # hot path: no per-element index math

        @pl.when(jnp.logical_not(tile_fully_in_bounds))
        def _():                             # boundary / overhang tiles only
            row_ids = base_row + lax.broadcasted_iota(
                jnp.int32, (block_rows, _LANES), 0)
            accumulate(row_ids < valid_rows)

        @pl.when(i == tiles_per_core - 1)
        def _():
            loss_out_ref[...] = jnp.sum(
                loss_acc[...], axis=0, keepdims=True).reshape(1, 1, _LANES)
            cnt_out_ref[...] = jnp.sum(
                cnt_acc[...], axis=0, keepdims=True).reshape(1, 1, _LANES)

    return kernel


@functools.partial(jax.jit, static_argnames=("block_rows", "reduction"))
def bce_with_logits_loss(preds, targets, block_rows: int = 8192,
                         reduction: str = "mean"):
    """Masked mean BCE-with-logits.  preds: logits (any shape); targets: same
    shape with values in {0, 1, IGNORE_INDEX}, any integer/float dtype (kept
    narrow in HBM and cast inside the kernel)."""
    assert preds.shape == targets.shape
    flat_p = preds.reshape(-1)               # keep native dtypes; cast in-kernel
    flat_t = targets.reshape(-1)
    n = flat_p.shape[0]

    rows = pl.cdiv(n, _LANES)
    # Tile height: a multiple of 32 sublanes that never exceeds the slab height
    # (tiny inputs get padded up to a single 32-row tile instead).
    block_rows = max(_SUBLANES,
                     (min(block_rows, rows) // _SUBLANES) * _SUBLANES)
    rows_padded = max(rows, block_rows)
    n_padded = rows_padded * _LANES
    if n_padded != n:
        # Only taken for lane-misaligned or tiny inputs; padded targets get
        # IGNORE_INDEX so they are masked out exactly like PyTorch's bool mask.
        pad = n_padded - n
        flat_p = jnp.pad(flat_p, (0, pad))
        flat_t = jnp.pad(flat_t, (0, pad), constant_values=IGNORE_INDEX)

    p2 = flat_p.reshape(rows_padded, _LANES)
    t2 = flat_t.reshape(rows_padded, _LANES)

    num_cores = _num_tensorcores()
    total_tiles = pl.cdiv(rows_padded, block_rows)
    tiles_per_core = pl.cdiv(total_tiles, num_cores)
    max_block = total_tiles - 1

    def row_block(c, i):
        # Clamp so over-hanging tiles of the last core never DMA out of bounds;
        # the kernel masks their contribution to zero via the row-index mask.
        return (jnp.minimum(c * tiles_per_core + i, max_block), 0)

    loss_parts, cnt_parts = pl.pallas_call(
        _make_bce_kernel(block_rows, rows_padded),
        out_shape=(
            jax.ShapeDtypeStruct((num_cores, 1, _LANES), jnp.float32),
            jax.ShapeDtypeStruct((num_cores, 1, _LANES), jnp.float32),
        ),
        grid_spec=pltpu.PrefetchScalarGridSpec(
            num_scalar_prefetch=0,
            grid=(num_cores, tiles_per_core),
            in_specs=[
                pl.BlockSpec((block_rows, _LANES), row_block),
                pl.BlockSpec((block_rows, _LANES), row_block),
            ],
            out_specs=(
                pl.BlockSpec((1, 1, _LANES), lambda c, i: (c, 0, 0)),
                pl.BlockSpec((1, 1, _LANES), lambda c, i: (c, 0, 0)),
            ),
            scratch_shapes=[
                pltpu.VMEM((_ACC_ROWS, _LANES), jnp.float32),
                pltpu.VMEM((_ACC_ROWS, _LANES), jnp.float32),
            ],
        ),
        compiler_params=pltpu.CompilerParams(
            dimension_semantics=("parallel", "arbitrary"),
            vmem_limit_bytes=32 * 1024 * 1024,
        ),
    )(p2, t2)

    loss_sum = jnp.sum(loss_parts)
    if reduction == "sum":
        return loss_sum
    # reduction == "mean": mean over the non-ignored elements only.
    # NOTE: loss/count partials are f32; for >~16.7M valid elements the final
    # scalar sums lose a few ULP vs. an exact integer count (same as before).
    # TODO(synk): reduction='none' (variable-length masked output) has no
    # static-shape Pallas equivalent and is not implemented.
    return loss_sum / jnp.sum(cnt_parts)


def _reference_loss(preds, targets):
    """Pure-JAX reference mirroring the PyTorch forward (reduction='mean')."""
    x = preds.astype(jnp.float32)
    t = targets.astype(jnp.float32)
    valid = t != jnp.float32(IGNORE_INDEX)
    bce = jnp.maximum(x, 0.0) - x * t + jnp.log1p(jnp.exp(-jnp.abs(x)))
    bce = jnp.where(valid, bce, 0.0)
    return jnp.sum(bce) / jnp.sum(valid.astype(jnp.float32))


if __name__ == "__main__":
    key = jax.random.PRNGKey(0)
    k_preds, k_labels, k_ignore = jax.random.split(key, 3)

    # NCHW inputs: preds are f32 logits; targets are uint8 binary labels with
    # ~10% of the pixels set to ignore_index (255), as in segmentation masks.
    shape = (2, 4, 16, 16)
    preds = jax.random.normal(k_preds, shape, dtype=jnp.float32)
    labels = jax.random.bernoulli(k_labels, p=0.5, shape=shape).astype(jnp.uint8)
    ignore = jax.random.bernoulli(k_ignore, p=0.1, shape=shape)
    targets = jnp.where(ignore, jnp.uint8(IGNORE_INDEX), labels)

    loss = bce_with_logits_loss(preds, targets)
    loss = jax.block_until_ready(loss)

    ref = _reference_loss(preds, targets)
    assert jnp.allclose(loss, ref, rtol=1e-5, atol=1e-5), (loss, ref)

    print("KERNEL_OK")
</pallas_src>

<mosaic_0001>
module attributes {stable_mosaic.version = 11 : i64} {
  func.func @kernel(%arg0: i32, %arg1: i32, %arg2: memref<32x128xf32, #tpu.memory_space<vmem>>, %arg3: memref<32x128xi8, #tpu.memory_space<vmem>>, %arg4: memref<1x1x128xf32, #tpu.memory_space<vmem>>, %arg5: memref<1x1x128xf32, #tpu.memory_space<vmem>>, %arg6: memref<32x128xf32, #tpu.memory_space<vmem>>, %arg7: memref<32x128xf32, #tpu.memory_space<vmem>>) attributes {dimension_semantics = [#tpu.dimension_semantics<parallel>, #tpu.dimension_semantics<arbitrary>], iteration_bounds = array<i64: 2, 1>, scalar_prefetch = 0 : i64, scratch_operands = 2 : i64, tpu.core_type = #tpu.core_type<tc>, window_params = [{transform_indices = @transform_0, window_bounds = array<i64: 32, 128>}, {transform_indices = @transform_1, window_bounds = array<i64: 32, 128>}, {transform_indices = @transform_2, window_bounds = array<i64: 1, 1, 128>}, {transform_indices = @transform_3, window_bounds = array<i64: 1, 1, 128>}]} {
    %c0_i32 = arith.constant 0 : i32
    %0 = arith.cmpi eq, %arg1, %c0_i32 : i32
    %1 = arith.extui %0 : i1 to i32
    %c0_i32_0 = arith.constant 0 : i32
    %2 = arith.cmpi ne, %1, %c0_i32_0 : i32
    scf.if %2 {
      %cst = arith.constant 0.000000e+00 : f32
      %16 = vector.broadcast %cst : f32 to vector<32x128xf32>
      %c0 = arith.constant 0 : index
      %c0_7 = arith.constant 0 : index
      %17 = vector.load %arg6[%c0, %c0_7] : memref<32x128xf32, #tpu.memory_space<vmem>>, vector<32x128xf32>
      tpu.vector_store %arg6[%c0, %c0_7], %16 {strides = array<i32>} : memref<32x128xf32, #tpu.memory_space<vmem>>, vector<32x128xf32>,
      %cst_8 = arith.constant 0.000000e+00 : f32
      %18 = vector.broadcast %cst_8 : f32 to vector<32x128xf32>
      %c0_9 = arith.constant 0 : index
      %c0_10 = arith.constant 0 : index
      %19 = vector.load %arg7[%c0_9, %c0_10] : memref<32x128xf32, #tpu.memory_space<vmem>>, vector<32x128xf32>
      tpu.vector_store %arg7[%c0_9, %c0_10], %18 {strides = array<i32>} : memref<32x128xf32, #tpu.memory_space<vmem>>, vector<32x128xf32>,
    } else {
    }
    %c1_i32 = arith.constant 1 : i32
    %3 = arith.muli %arg0, %c1_i32 : i32
    %4 = arith.addi %3, %arg1 : i32
    %c32_i32 = arith.constant 32 : i32
    %5 = arith.muli %4, %c32_i32 : i32
    %c32_i32_1 = arith.constant 32 : i32
    %6 = arith.addi %5, %c32_i32_1 : i32
    %c32_i32_2 = arith.constant 32 : i32
    %7 = arith.cmpi sle, %6, %c32_i32_2 : i32
    %8 = arith.extui %7 : i1 to i32
    %c0_i32_3 = arith.constant 0 : i32
    %9 = arith.cmpi ne, %8, %c0_i32_3 : i32
    scf.if %9 {
      %c0 = arith.constant 0 : index
      %c0_7 = arith.constant 0 : index
      %16 = vector.load %arg2[%c0, %c0_7] : memref<32x128xf32, #tpu.memory_space<vmem>>, vector<32x128xf32>
      %c0_8 = arith.constant 0 : index
      %c0_9 = arith.constant 0 : index
      %17 = vector.load %arg3[%c0_8, %c0_9] : memref<32x128xi8, #tpu.memory_space<vmem>>, vector<32x128xi8>
      %18 = arith.uitofp %17 : vector<32x128xi8> to vector<32x128xf32>
      %cst = arith.constant 2.550000e+02 : f32
      %19 = vector.broadcast %cst : f32 to vector<32x128xf32>
      %20 = arith.cmpf one, %18, %19 : vector<32x128xf32>
      %cst_10 = arith.constant 0.000000e+00 : f32
      %21 = vector.broadcast %cst_10 : f32 to vector<32x128xf32>
      %22 = arith.maximumf %16, %21 : vector<32x128xf32>
      %23 = arith.mulf %16, %18 : vector<32x128xf32>
      %24 = arith.subf %22, %23 : vector<32x128xf32>
      %25 = math.absf %16 : vector<32x128xf32>
      %cst_11 = arith.constant 0.000000e+00 : f32
      %26 = vector.broadcast %cst_11 : f32 to vector<32x128xf32>
      %27 = arith.subf %26, %25 : vector<32x128xf32>
      %28 = math.exp %27 : vector<32x128xf32>
      %29 = math.log1p %28 : vector<32x128xf32>
      %30 = arith.addf %24, %29 : vector<32x128xf32>
      %cst_12 = arith.constant 0.000000e+00 : f32
      %31 = vector.broadcast %cst_12 : f32 to vector<32x128xf32>
      %32 = arith.select %20, %30, %31 : vector<32x128xi1>, vector<32x128xf32>
      %33 = arith.extui %20 : vector<32x128xi1> to vector<32x128xi32>
      %34 = arith.sitofp %33 : vector<32x128xi32> to vector<32x128xf32>
      %c0_13 = arith.constant 0 : index
      %c0_14 = arith.constant 0 : index
      %35 = vector.load %arg6[%c0_13, %c0_14] : memref<32x128xf32, #tpu.memory_space<vmem>>, vector<32x128xf32>
      %36 = vector.shape_cast %32 : vector<32x128xf32> to vector<1x32x128xf32>
      %cst_15 = arith.constant dense<0.000000e+00> : vector<32x128xf32>
      %37 = vector.multi_reduction <add>, %36, %cst_15 [0] : vector<1x32x128xf32> to vector<32x128xf32>
      %38 = arith.addf %35, %37 : vector<32x128xf32>
      %c0_16 = arith.constant 0 : index
      %c0_17 = arith.constant 0 : index
      %39 = vector.load %arg6[%c0_16, %c0_17] : memref<32x128xf32, #tpu.memory_space<vmem>>, vector<32x128xf32>
      tpu.vector_store %arg6[%c0_16, %c0_17], %38 {strides = array<i32>} : memref<32x128xf32, #tpu.memory_space<vmem>>, vector<32x128xf32>,
      %c0_18 = arith.constant 0 : index
      %c0_19 = arith.constant 0 : index
      %40 = vector.load %arg7[%c0_18, %c0_19] : memref<32x128xf32, #tpu.memory_space<vmem>>, vector<32x128xf32>
      %41 = vector.shape_cast %34 : vector<32x128xf32> to vector<1x32x128xf32>
      %cst_20 = arith.constant dense<0.000000e+00> : vector<32x128xf32>
      %42 = vector.multi_reduction <add>, %41, %cst_20 [0] : vector<1x32x128xf32> to vector<32x128xf32>
      %43 = arith.addf %40, %42 : vector<32x128xf32>
      %c0_21 = arith.constant 0 : index
      %c0_22 = arith.constant 0 : index
      %44 = vector.load %arg7[%c0_21, %c0_22] : memref<32x128xf32, #tpu.memory_space<vmem>>, vector<32x128xf32>
      tpu.vector_store %arg7[%c0_21, %c0_22], %43 {strides = array<i32>} : memref<32x128xf32, #tpu.memory_space<vmem>>, vector<32x128xf32>,
    } else {
    }
    %true = arith.constant true
    %10 = arith.xori %7, %true : i1
    %11 = arith.extui %10 : i1 to i32
    %c0_i32_4 = arith.constant 0 : i32
    %12 = arith.cmpi ne, %11, %c0_i32_4 : i32
    scf.if %12 {
      %16 = tpu.iota {dimensions = array<i32: 0>} : vector<32x128xi32>
      %17 = vector.broadcast %5 : i32 to vector<32x128xi32>
      %18 = arith.addi %17, %16 : vector<32x128xi32>
      %c32_i32_7 = arith.constant 32 : i32
      %19 = vector.broadcast %c32_i32_7 : i32 to vector<32x128xi32>
      %20 = arith.cmpi slt, %18, %19 : vector<32x128xi32>
      %c0 = arith.constant 0 : index
      %c0_8 = arith.constant 0 : index
      %21 = vector.load %arg2[%c0, %c0_8] : memref<32x128xf32, #tpu.memory_space<vmem>>, vector<32x128xf32>
      %c0_9 = arith.constant 0 : index
      %c0_10 = arith.constant 0 : index
      %22 = vector.load %arg3[%c0_9, %c0_10] : memref<32x128xi8, #tpu.memory_space<vmem>>, vector<32x128xi8>
      %23 = arith.uitofp %22 : vector<32x128xi8> to vector<32x128xf32>
      %cst = arith.constant 2.550000e+02 : f32
      %24 = vector.broadcast %cst : f32 to vector<32x128xf32>
      %25 = arith.cmpf one, %23, %24 : vector<32x128xf32>
      %26 = arith.andi %25, %20 : vector<32x128xi1>
      %cst_11 = arith.constant 0.000000e+00 : f32
      %27 = vector.broadcast %cst_11 : f32 to vector<32x128xf32>
      %28 = arith.maximumf %21, %27 : vector<32x128xf32>
      %29 = arith.mulf %21, %23 : vector<32x128xf32>
      %30 = arith.subf %28, %29 : vector<32x128xf32>
      %31 = math.absf %21 : vector<32x128xf32>
      %cst_12 = arith.constant 0.000000e+00 : f32
      %32 = vector.broadcast %cst_12 : f32 to vector<32x128xf32>
      %33 = arith.subf %32, %31 : vector<32x128xf32>
      %34 = math.exp %33 : vector<32x128xf32>
      %35 = math.log1p %34 : vector<32x128xf32>
      %36 = arith.addf %30, %35 : vector<32x128xf32>
      %cst_13 = arith.constant 0.000000e+00 : f32
      %37 = vector.broadcast %cst_13 : f32 to vector<32x128xf32>
      %38 = arith.select %26, %36, %37 : vector<32x128xi1>, vector<32x128xf32>
      %39 = arith.extui %26 : vector<32x128xi1> to vector<32x128xi32>
      %40 = arith.sitofp %39 : vector<32x128xi32> to vector<32x128xf32>
      %c0_14 = arith.constant 0 : index
      %c0_15 = arith.constant 0 : index
      %41 = vector.load %arg6[%c0_14, %c0_15] : memref<32x128xf32, #tpu.memory_space<vmem>>, vector<32x128xf32>
      %42 = vector.shape_cast %38 : vector<32x128xf32> to vector<1x32x128xf32>
      %cst_16 = arith.constant dense<0.000000e+00> : vector<32x128xf32>
      %43 = vector.multi_reduction <add>, %42, %cst_16 [0] : vector<1x32x128xf32> to vector<32x128xf32>
      %44 = arith.addf %41, %43 : vector<32x128xf32>
      %c0_17 = arith.constant 0 : index
      %c0_18 = arith.constant 0 : index
      %45 = vector.load %arg6[%c0_17, %c0_18] : memref<32x128xf32, #tpu.memory_space<vmem>>, vector<32x128xf32>
      tpu.vector_store %arg6[%c0_17, %c0_18], %44 {strides = array<i32>} : memref<32x128xf32, #tpu.memory_space<vmem>>, vector<32x128xf32>,
      %c0_19 = arith.constant 0 : index
      %c0_20 = arith.constant 0 : index
      %46 = vector.load %arg7[%c0_19, %c0_20] : memref<32x128xf32, #tpu.memory_space<vmem>>, vector<32x128xf32>
      %47 = vector.shape_cast %40 : vector<32x128xf32> to vector<1x32x128xf32>
      %cst_21 = arith.constant dense<0.000000e+00> : vector<32x128xf32>
      %48 = vector.multi_reduction <add>, %47, %cst_21 [0] : vector<1x32x128xf32> to vector<32x128xf32>
      %49 = arith.addf %46, %48 : vector<32x128xf32>
      %c0_22 = arith.constant 0 : index
      %c0_23 = arith.constant 0 : index
      %50 = vector.load %arg7[%c0_22, %c0_23] : memref<32x128xf32, #tpu.memory_space<vmem>>, vector<32x128xf32>
      tpu.vector_store %arg7[%c0_22, %c0_23], %49 {strides = array<i32>} : memref<32x128xf32, #tpu.memory_space<vmem>>, vector<32x128xf32>,
    } else {
    }
    %c0_i32_5 = arith.constant 0 : i32
    %13 = arith.cmpi eq, %arg1, %c0_i32_5 : i32
    %14 = arith.extui %13 : i1 to i32
    %c0_i32_6 = arith.constant 0 : i32
    %15 = arith.cmpi ne, %14, %c0_i32_6 : i32
    scf.if %15 {
      %c0 = arith.constant 0 : index
      %c0_7 = arith.constant 0 : index
      %16 = vector.load %arg6[%c0, %c0_7] : memref<32x128xf32, #tpu.memory_space<vmem>>, vector<32x128xf32>
      %cst = arith.constant dense<0.000000e+00> : vector<128xf32>
      %17 = vector.multi_reduction <add>, %16, %cst [0] : vector<32x128xf32> to vector<128xf32>
      %18 = vector.shape_cast %17 : vector<128xf32> to vector<1x128xf32>
      %19 = vector.shape_cast %18 : vector<1x128xf32> to vector<1x1x128xf32>
      %c0_8 = arith.constant 0 : index
      %c0_9 = arith.constant 0 : index
      %c0_10 = arith.constant 0 : index
      %20 = vector.load %arg4[%c0_8, %c0_9, %c0_10] : memref<1x1x128xf32, #tpu.memory_space<vmem>>, vector<1x1x128xf32>
      tpu.vector_store %arg4[%c0_8, %c0_9, %c0_10], %19 {strides = array<i32>} : memref<1x1x128xf32, #tpu.memory_space<vmem>>, vector<1x1x128xf32>,
      %c0_11 = arith.constant 0 : index
      %c0_12 = arith.constant 0 : index
      %21 = vector.load %arg7[%c0_11, %c0_12] : memref<32x128xf32, #tpu.memory_space<vmem>>, vector<32x128xf32>
      %cst_13 = arith.constant dense<0.000000e+00> : vector<128xf32>
      %22 = vector.multi_reduction <add>, %21, %cst_13 [0] : vector<32x128xf32> to vector<128xf32>
      %23 = vector.shape_cast %22 : vector<128xf32> to vector<1x128xf32>
      %24 = vector.shape_cast %23 : vector<1x128xf32> to vector<1x1x128xf32>
      %c0_14 = arith.constant 0 : index
      %c0_15 = arith.constant 0 : index
      %c0_16 = arith.constant 0 : index
      %25 = vector.load %arg5[%c0_14, %c0_15, %c0_16] : memref<1x1x128xf32, #tpu.memory_space<vmem>>, vector<1x1x128xf32>
      tpu.vector_store %arg5[%c0_14, %c0_15, %c0_16], %24 {strides = array<i32>} : memref<1x1x128xf32, #tpu.memory_space<vmem>>, vector<1x1x128xf32>,
    } else {
    }
    return
  }
  func.func @transform_0(%arg0: i32, %arg1: i32) -> (i32, i32) {
    %c1_i32 = arith.constant 1 : i32
    %0 = arith.muli %arg0, %c1_i32 : i32
    %1 = arith.addi %0, %arg1 : i32
    %c0_i32 = arith.constant 0 : i32
    %2 = arith.minsi %1, %c0_i32 : i32
    %c0_i32_0 = arith.constant 0 : i32
    %c0_i32_1 = arith.constant 0 : i32
    return %2, %c0_i32_0 : i32, i32
  }
  func.func @transform_1(%arg0: i32, %arg1: i32) -> (i32, i32) {
    %c1_i32 = arith.constant 1 : i32
    %0 = arith.muli %arg0, %c1_i32 : i32
    %1 = arith.addi %0, %arg1 : i32
    %c0_i32 = arith.constant 0 : i32
    %2 = arith.minsi %1, %c0_i32 : i32
    %c0_i32_0 = arith.constant 0 : i32
    %c0_i32_1 = arith.constant 0 : i32
    return %2, %c0_i32_0 : i32, i32
  }
  func.func @transform_2(%arg0: i32, %arg1: i32) -> (i32, i32, i32) {
    %c0_i32 = arith.constant 0 : i32
    %c0_i32_0 = arith.constant 0 : i32
    %c0_i32_1 = arith.constant 0 : i32
    return %arg0, %c0_i32, %c0_i32_0 : i32, i32, i32
  }
  func.func @transform_3(%arg0: i32, %arg1: i32) -> (i32, i32, i32) {
    %c0_i32 = arith.constant 0 : i32
    %c0_i32_0 = arith.constant 0 : i32
    %c0_i32_1 = arith.constant 0 : i32
    return %arg0, %c0_i32, %c0_i32_0 : i32, i32, i32
  }
}

</mosaic_0001>

<llo_original>
// kernel: bce_with_logits_loss.1
$region0: #{bce_with_logits_loss.1}
  #allocation0 [shape = 'u32[]', space=smem, size = 0x4, offset = 0x4, fixed_abs, tag = 'smem constant byte address 0x4 - core index']
  #allocation1 [shape = 'u32[144,128]{1,0:T(1,128)}', space=vmem, size = 0x12000, scoped, tag = 'internal scratch']
  #allocation2 [shape = 'f32[32,128]{1,0:T(8,128)}', space=vmem, size = 0x4000, scoped, tag = 'scratch operand']
  #allocation3 [shape = 'f32[32,128]{1,0:T(8,128)}', space=vmem, size = 0x4000, scoped, tag = 'scratch operand']
  %s0 = inlined_call_operand.vmem [shape: f32[32,128], index: 0, kind: input, shape index: {}]
  %s1 = inlined_call_operand.vmem [shape: u8[32,128], index: 1, kind: input, shape index: {}]
  %s2 = inlined_call_operand.vmem [shape: f32[2,1,128], index: 2, kind: output, shape index: {0}]
  %s3 = inlined_call_operand.vmem [shape: f32[2,1,128], index: 3, kind: output, shape index: {1}]
  %4 = xla_tuple %s2, %s3
  %s5 = sld [smem:[#allocation0]]
  $region65: #{bce_with_logits_loss.1} parent=0
    _
  %s7 = ssub.s32 1, %s5
  %s8 = scalar_select 0, %s7, %s5
  loop: start=0, step=1, limit=4
  $region2: #{bce_with_logits_loss.1} parent=0 // loop_pre_header
    _
  $region3: #{bce_with_logits_loss.1} parent=0 // loop_header
    %s10 = sphi 0, %s14
    %p11 = scmp.ge.s32.totalorder %s10, 4
    %s17 = sphi 0, %s29
    %s18 = sphi 0, %s25
    %s19 = sphi 0, %s17
    %s20 = sphi 0, %s18
    %s21 = sphi 0, %s19
    %s22 = sphi 0, %s20
    %s38 = sphi 0, %s40
    %s41 = sphi 0, %s38
    %s42 = sphi 0, %s41
    %s58 = sphi 0, %s42
    %s70 = sphi 0, %s72
    %s73 = sphi 0, %s70
    %s74 = sphi 0, %s73
    %s90 = sphi 0, %s74
    %s96 = sphi 0, %s98
    %s99 = sphi 0, %s96
    %s100 = sphi 0, %s99
    %s116 = sphi 0, %s100
    %s122 = sphi 0, %s124
    %s125 = sphi 0, %s122
    %s126 = sphi 0, %s125
    %s142 = sphi 0, %s126
  $region4: #{bce_with_logits_loss.1} parent=0 // loop_header_branch
    %13 = sbr.rel (%p11) target = $region8
  $region5: #{bce_with_logits_loss.1} parent=0 // loop_body
    %s15 = ssub.s32 %s10, 1
    %s16 = ssub.s32 %s10, 2
    %s23 = sadd.s32 1, %s18
    %p24 = scmp.ge.s32.totalorder %s23, 1
    %s25 = scalar_select %p24, 0, %s23
    %s26 = sadd.s32 1, %s17
    %s27 = scalar_select %p24, %s26, %s17
    %p28 = scmp.ge.s32.totalorder %s27, 2
    %s29 = scalar_select %p28, 0, %s27
    %s30 = sadd.s32 %s17, %s18
    %p31 = scmp.lt.s32.totalorder %s30, 0
    %s32 = scalar_select %p31, %s30, 0
    %s33 = sadd.s32 %s29, %s25
    %p34 = scmp.lt.s32.totalorder %s33, 0
    %s35 = scalar_select %p34, %s33, 0
    %s36 = ssub.s32 %s32, %s35
    %p37 = scmp.eq.s32.totalorder %s36, 0
    %s39 = sadd.s32 %s38, 1
    %s40 = scalar_select %p37, %s38, %s39
    %p43 = pneg %p37
    %p44 = scmp.eq.s32.totalorder %s10, 1
    %p45 = por %p43, %p44
    %p46 = scmp.ne.s32.totalorder %s38, %s41
    %p47 = scmp.eq.s32.totalorder %s10, 0
    %p48 = por %p46, %p47
    %p49 = scmp.ne.s32.totalorder %s38, %s41
    %p50 = scmp.eq.s32.totalorder %s15, 1
    %p51 = por %p49, %p50
    %p52 = scmp.ne.s32.totalorder %s41, %s42
    %p53 = scmp.eq.s32.totalorder %s15, 0
    %p54 = por %p52, %p53
    %p55 = scmp.ne.s32.totalorder %s41, %s42
    %p56 = scmp.eq.s32.totalorder %s16, 1
    %p57 = por %p55, %p56
    %p59 = scmp.ne.s32.totalorder %s42, %s58
    %p60 = scmp.eq.s32.totalorder %s16, 0
    %p61 = por %p59, %p60
    %s62 = sadd.s32 %s17, %s18
    %p63 = scmp.lt.s32.totalorder %s62, 0
    %s64 = scalar_select %p63, %s62, 0
    %s65 = sadd.s32 %s29, %s25
    %p66 = scmp.lt.s32.totalorder %s65, 0
    %s67 = scalar_select %p66, %s65, 0
    %s68 = ssub.s32 %s64, %s67
    %p69 = scmp.eq.s32.totalorder %s68, 0
    %s71 = sadd.s32 %s70, 1
    %s72 = scalar_select %p69, %s70, %s71
    %p75 = pneg %p69
    %p76 = scmp.eq.s32.totalorder %s10, 1
    %p77 = por %p75, %p76
    %p78 = scmp.ne.s32.totalorder %s70, %s73
    %p79 = scmp.eq.s32.totalorder %s10, 0
    %p80 = por %p78, %p79
    %p81 = scmp.ne.s32.totalorder %s70, %s73
    %p82 = scmp.eq.s32.totalorder %s15, 1
    %p83 = por %p81, %p82
    %p84 = scmp.ne.s32.totalorder %s73, %s74
    %p85 = scmp.eq.s32.totalorder %s15, 0
    %p86 = por %p84, %p85
    %p87 = scmp.ne.s32.totalorder %s73, %s74
    %p88 = scmp.eq.s32.totalorder %s16, 1
    %p89 = por %p87, %p88
    %p91 = scmp.ne.s32.totalorder %s74, %s90
    %p92 = scmp.eq.s32.totalorder %s16, 0
    %p93 = por %p91, %p92
    %s94 = ssub.s32 %s17, %s29
    %p95 = scmp.eq.s32.totalorder %s94, 0
    %s97 = sadd.s32 %s96, 1
    %s98 = scalar_select %p95, %s96, %s97
    %p101 = pneg %p95
    %p102 = scmp.eq.s32.totalorder %s10, 1
    %p103 = por %p101, %p102
    %p104 = scmp.ne.s32.totalorder %s96, %s99
    %p105 = scmp.eq.s32.totalorder %s10, 0
    %p106 = por %p104, %p105
    %p107 = scmp.ne.s32.totalorder %s96, %s99
    %p108 = scmp.eq.s32.totalorder %s15, 1
    %p109 = por %p107, %p108
    %p110 = scmp.ne.s32.totalorder %s99, %s100
    %p111 = scmp.eq.s32.totalorder %s15, 0
    %p112 = por %p110, %p111
    %p113 = scmp.ne.s32.totalorder %s99, %s100
    %p114 = scmp.eq.s32.totalorder %s16, 1
    %p115 = por %p113, %p114
    %p117 = scmp.ne.s32.totalorder %s100, %s116
    %p118 = scmp.eq.s32.totalorder %s16, 0
    %p119 = por %p117, %p118
    %s120 = ssub.s32 %s17, %s29
    %p121 = scmp.eq.s32.totalorder %s120, 0
    %s123 = sadd.s32 %s122, 1
    %s124 = scalar_select %p121, %s122, %s123
    %p127 = pneg %p121
    %p128 = scmp.eq.s32.totalorder %s10, 1
    %p129 = por %p127, %p128
    %p130 = scmp.ne.s32.totalorder %s122, %s125
    %p131 = scmp.eq.s32.totalorder %s10, 0
    %p132 = por %p130, %p131
    %p133 = scmp.ne.s32.totalorder %s122, %s125
    %p134 = scmp.eq.s32.totalorder %s15, 1
    %p135 = por %p133, %p134
    %p136 = scmp.ne.s32.totalorder %s125, %s126
    %p137 = scmp.eq.s32.totalorder %s15, 0
    %p138 = por %p136, %p137
    %p139 = scmp.ne.s32.totalorder %s125, %s126
    %p140 = scmp.eq.s32.totalorder %s16, 1
    %p141 = por %p139, %p140
    %p143 = scmp.ne.s32.totalorder %s126, %s142
    %p144 = scmp.eq.s32.totalorder %s16, 0
    %p145 = por %p143, %p144
    %p146 = scmp.le.s32.totalorder 1, %s10
    %p147 = scmp.lt.s32.totalorder %s10, 3
    %p148 = pnand %p146, %p147
    %p149 = pneg %p148
    // Predicated region
    $region9: #{bce_with_logits_loss.1} parent=5 // pred_check
      _
    $region10: #{bce_with_logits_loss.1} parent=5 // pred_check_branch
      %151 = sbr.rel (%p148) target = $region12
    $region11: #{bce_with_logits_loss.1} parent=5 // pred_region
      %s152 = ssub.s32 %s10, 1
    $region12: #{bce_with_logits_loss.1} parent=5 // pred_fallthru
      _
    %p153 = scmp.lt.s32.totalorder %s10, 2
    // Predicated region
    $region13: #{bce_with_logits_loss.1} parent=5 // pred_check
      %p154 = pneg %p153
    $region14: #{bce_with_logits_loss.1} parent=5 // pred_check_branch
      %156 = sbr.rel (%p154) target = $region16
    $region15: #{bce_with_logits_loss.1} parent=5 // pred_region
      // Predicated region
      $region17: #{bce_with_logits_loss.1} parent=15 // pred_check
        %p157 = pneg %p48
      $region18: #{bce_with_logits_loss.1} parent=15 // pred_check_branch
        %159 = sbr.rel (%p157) target = $region20
      $region19: #{bce_with_logits_loss.1} parent=15 // pred_region
        %s160 = sadd.s32 %s17, %s18
        %p161 = scmp.lt.s32.totalorder %s160, 0
        %s162 = scalar_select %p161, %s160, 0
        %s163 = smul.u32 4, %s162
        %p164 = scmp.lt.s32.totalorder %s163, 3
        %s165 = scalar_select %p164, %s163, 3
        %s166 = smul.addr %s165, 8
        %s167 = scalar_lea.vmem %s0, %s166
        %s168 = sadd.s32 %s17, %s18
        %p169 = scmp.lt.s32.totalorder %s168, 0
        %s170 = scalar_select %p169, %s168, 0
        %s171 = smul.u32 4, %s170
      $region20: #{bce_with_logits_loss.1} parent=15 // pred_fallthru
        _
      // Predicated region
      $region21: #{bce_with_logits_loss.1} parent=15 // pred_check
        %p172 = pneg %p80
      $region22: #{bce_with_logits_loss.1} parent=15 // pred_check_branch
        %174 = sbr.rel (%p172) target = $region24
      $region23: #{bce_with_logits_loss.1} parent=15 // pred_region
        %s175 = sadd.s32 %s17, %s18
        %p176 = scmp.lt.s32.totalorder %s175, 0
        %s177 = scalar_select %p176, %s175, 0
        %p178 = scmp.lt.s32.totalorder %s177, 0
        %s179 = scalar_select %p178, %s177, 0
        %s180 = smul.addr %s179, 8
        %s181 = scalar_lea.vmem %s1, %s180
        %s182 = sadd.s32 %s17, %s18
        %p183 = scmp.lt.s32.totalorder %s182, 0
        %s184 = scalar_select %p183, %s182, 0
      $region24: #{bce_with_logits_loss.1} parent=15 // pred_fallthru
        _
    $region16: #{bce_with_logits_loss.1} parent=5 // pred_fallthru
      _
    %p185 = scmp.le.s32.totalorder 1, %s10
    %p186 = scmp.lt.s32.totalorder %s10, 3
    %p187 = pnand %p185, %p186
    %p188 = pneg %p187
    // Predicated region
    $region25: #{bce_with_logits_loss.1} parent=5 // pred_check
      _
    $region26: #{bce_with_logits_loss.1} parent=5 // pred_check_branch
      %190 = sbr.rel (%p187) target = $region28
    $region27: #{bce_with_logits_loss.1} parent=5 // pred_region
      %s191 = ssub.s32 %s10, 1
      %s192 = sadd.s32 %s19, %s20
      %p193 = scmp.lt.s32.totalorder %s192, 0
      %s194 = scalar_select %p193, %s192, 0
      %s195 = smul.u32 4, %s194
      %p196 = scmp.lt.s32.totalorder %s195, 3
      %s197 = scalar_select %p196, %s195, 3
      %s198 = smul.addr %s197, 8
      %s199 = scalar_lea.vmem %s0, %s198
      %p200 = pneg %p54
      %p201 = pneg %p51
      %s202 = sadd.s32 %s19, %s20
      %p203 = scmp.lt.s32.totalorder %s202, 0
      %s204 = scalar_select %p203, %s202, 0
      %p205 = scmp.lt.s32.totalorder %s204, 0
      %s206 = scalar_select %p205, %s204, 0
      %s207 = smul.addr %s206, 8
      %s208 = scalar_lea.vmem %s1, %s207
      %p209 = pneg %p86
      %p210 = pneg %p83
      %p211 = pneg %p112
      %p212 = pneg %p109
      %p213 = scmp.lt.s32.totalorder %s19, 1
      %s214 = scalar_select %p213, %s19, 1
      %s215 = scalar_lea.vmem %s2, %s214
      %p216 = pneg %p138
      %p217 = pneg %p135
      %p218 = scmp.lt.s32.totalorder %s19, 1
      %s219 = scalar_select %p218, %s19, 1
      %s220 = scalar_lea.vmem %s3, %s219
      %s221 = sadd.s32 %s19, %s20
      %p222 = scmp.lt.s32.totalorder %s221, 0
      %s223 = scalar_select %p222, %s221, 0
      %s224 = smul.u32 4, %s223
      %p225 = scmp.lt.s32.totalorder %s224, 3
      %s226 = scalar_select %p225, %s224, 3
      %s227 = smul.addr %s226, 8
      %s228 = scalar_lea.vmem %s0, %s227
      %s229 = sadd.s32 %s19, %s20
      %p230 = scmp.lt.s32.totalorder %s229, 0
      %s231 = scalar_select %p230, %s229, 0
      %s232 = smul.u32 4, %s231
      %s233 = sadd.s32 %s19, %s20
      %p234 = scmp.lt.s32.totalorder %s233, 0
      %s235 = scalar_select %p234, %s233, 0
      %p236 = scmp.lt.s32.totalorder %s235, 0
      %s237 = scalar_select %p236, %s235, 0
      %s238 = smul.addr %s237, 8
      %s239 = scalar_lea.vmem %s1, %s238
      %s240 = sadd.s32 %s19, %s20
      %p241 = scmp.lt.s32.totalorder %s240, 0
      %s242 = scalar_select %p241, %s240, 0
      %p243 = scmp.lt.s32.totalorder %s19, 1
      %s244 = scalar_select %p243, %s19, 1
      %s245 = scalar_lea.vmem %s2, %s244
      %p246 = scmp.lt.s32.totalorder %s19, 1
      %s247 = scalar_select %p246, %s19, 1
      %s248 = scalar_lea.vmem %s3, %s247
      %p249 = scmp.eq.s32.totalorder %s20, 0
      // Predicated region
      $region29: #{bce_with_logits_loss.1} parent=27 // pred_check
        %p250 = pneg %p249
      $region30: #{bce_with_logits_loss.1} parent=27 // pred_check_branch
        %252 = sbr.rel (%p250) target = $region32
      $region31: #{bce_with_logits_loss.1} parent=27 // pred_region
        %253 = vst [vmem:[#allocation2] sm:$0xff] 0.0
        %254 = vst [vmem:[#allocation2 + $0x8] sm:$0xff] 0.0
        %255 = vst [vmem:[#allocation2 + $0x10] sm:$0xff] 0.0
        %256 = vst [vmem:[#allocation2 + $0x18] sm:$0xff] 0.0
        %257 = vst [vmem:[#allocation3] sm:$0xff] 0.0
        %258 = vst [vmem:[#allocation3 + $0x8] sm:$0xff] 0.0
        %259 = vst [vmem:[#allocation3 + $0x10] sm:$0xff] 0.0
        %260 = vst [vmem:[#allocation3 + $0x18] sm:$0xff] 0.0
      $region32: #{bce_with_logits_loss.1} parent=27 // pred_fallthru
        _
      %s261 = sadd.s32 %s19, %s20
      %s262 = smul.u32 %s261, 32
      %s263 = sadd.s32 %s262, 32
      %p264 = scmp.le.s32.totalorder %s263, 32
      // Predicated region
      $region33: #{bce_with_logits_loss.1} parent=27 // pred_check
        %p265 = pneg %p264
      $region34: #{bce_with_logits_loss.1} parent=27 // pred_check_branch
        %267 = sbr.rel (%p265) target = $region36
      $region35: #{bce_with_logits_loss.1} parent=27 // pred_region
        %v268 = vld [vmem:[%s228] sm:$0xff]
        %v269 = vld [vmem:[%s228 + $0x8] sm:$0xff]
        %v270 = vld [vmem:[%s228 + $0x10] sm:$0xff]
        %v271 = vld [vmem:[%s228 + $0x18] sm:$0xff]
        %v272 = vld [vmem:[%s239] sm:$0xff]
        %v273 = vunpack.c.0.s8 %v272
        %v274 = vunpack.c.1.s8 %v272
        %v275 = vunpack.c.2.s8 %v272
        %v276 = vunpack.c.3.s8 %v272
        %v277 = vand.u32 %v273, 255
        %v278 = vand.u32 %v274, 255
        %v279 = vand.u32 %v275, 255
        %v280 = vand.u32 %v276, 255
        %v281 = vcvt.s32.f32 %v277
        %v282 = vcvt.s32.f32 %v278
        %v283 = vcvt.s32.f32 %v279
        %v284 = vcvt.s32.f32 %v280
        %vm285 = vcmp.ne.f32.partialorder %v281, 255.0
        %vm286 = vcmp.ne.f32.partialorder %v282, 255.0
        %vm287 = vcmp.ne.f32.partialorder %v283, 255.0
        %vm288 = vcmp.ne.f32.partialorder %v284, 255.0
        %v289 = vmax.f32 %v268, 0.0
        %v290 = vmax.f32 %v269, 0.0
        %v291 = vmax.f32 %v270, 0.0
        %v292 = vmax.f32 %v271, 0.0
        %v293 = vmul.f32 %v268, %v281
        %v294 = vmul.f32 %v269, %v282
        %v295 = vmul.f32 %v270, %v283
        %v296 = vmul.f32 %v271, %v284
        %v297 = vsub.f32 %v289, %v293
        %v298 = vsub.f32 %v290, %v294
        %v299 = vsub.f32 %v291, %v295
        %v300 = vsub.f32 %v292, %v296
        %v301 = vand.u32 2147483647, %v268
        %v302 = vand.u32 2147483647, %v269
        %v303 = vand.u32 2147483647, %v270
        %v304 = vand.u32 2147483647, %v271
        %v305 = vsub.f32 0.0, %v301
        %v306 = vsub.f32 0.0, %v302
        %v307 = vsub.f32 0.0, %v303
        %v308 = vsub.f32 0.0, %v304
        %v309 = vmul.f32 %v305, 1.442695
        %v310 = vpow.pop %v309
        %v311 = vmul.f32 %v306, 1.442695
        %v312 = vpow.pop %v311
        %v313 = vmul.f32 %v307, 1.442695
        %v314 = vpow.pop %v313
        %v315 = vmul.f32 %v308, 1.442695
        %v316 = vpow.pop %v315
        %v317 = vadd.f32 %v310, 1.0
        %v318 = vlog2.pop %v317
        %v319 = vmul.f32 %v318, 0.6931472
        %v320 = vmul.f32 -0.5, %v310
        %v321 = vadd.f32 %v320, 1.0
        %v322 = vmul.f32 %v321, %v310
        %v323 = vand.u32 2147483647, %v310
        %vm324 = vcmp.lt.f32.partialorder %v323, 0.0004427343
        %v325 = vsel %vm324, %v322, %v319
        %v326 = vadd.f32 %v312, 1.0
        %v327 = vlog2.pop %v326
        %v328 = vmul.f32 %v327, 0.6931472
        %v329 = vmul.f32 -0.5, %v312
        %v330 = vadd.f32 %v329, 1.0
        %v331 = vmul.f32 %v330, %v312
        %v332 = vand.u32 2147483647, %v312
        %vm333 = vcmp.lt.f32.partialorder %v332, 0.0004427343
        %v334 = vsel %vm333, %v331, %v328
        %v335 = vadd.f32 %v314, 1.0
        %v336 = vlog2.pop %v335
        %v337 = vmul.f32 %v336, 0.6931472
        %v338 = vmul.f32 -0.5, %v314
        %v339 = vadd.f32 %v338, 1.0
        %v340 = vmul.f32 %v339, %v314
        %v341 = vand.u32 2147483647, %v314
        %vm342 = vcmp.lt.f32.partialorder %v341, 0.0004427343
        %v343 = vsel %vm342, %v340, %v337
        %v344 = vadd.f32 %v316, 1.0
        %v345 = vlog2.pop %v344
        %v346 = vmul.f32 %v345, 0.6931472
        %v347 = vmul.f32 -0.5, %v316
        %v348 = vadd.f32 %v347, 1.0
        %v349 = vmul.f32 %v348, %v316
        %v350 = vand.u32 2147483647, %v316
        %vm351 = vcmp.lt.f32.partialorder %v350, 0.0004427343
        %v352 = vsel %vm351, %v349, %v346
        %v353 = vadd.f32 %v297, %v325
        %v354 = vadd.f32 %v298, %v334
        %v355 = vadd.f32 %v299, %v343
        %v356 = vadd.f32 %v300, %v352
        %v357 = vsel %vm285, %v353, 0.0
        %v358 = vsel %vm286, %v354, 0.0
        %v359 = vsel %vm287, %v355, 0.0
        %v360 = vsel %vm288, %v356, 0.0
        %v361 = vsel %vm285, 1, 0
        %v362 = vsel %vm286, 1, 0
        %v363 = vsel %vm287, 1, 0
        %v364 = vsel %vm288, 1, 0
        %v365 = vcvt.s32.f32 %v361
        %v366 = vcvt.s32.f32 %v362
        %v367 = vcvt.s32.f32 %v363
        %v368 = vcvt.s32.f32 %v364
        %v369 = vld [vmem:[#allocation2] sm:$0xff]
        %v370 = vld [vmem:[#allocation2 + $0x8] sm:$0xff]
        %v371 = vld [vmem:[#allocation2 + $0x10] sm:$0xff]
        %v372 = vld [vmem:[#allocation2 + $0x18] sm:$0xff]
        %v373 = vadd.f32 %v357, 0.0
        %v374 = vadd.f32 %v358, 0.0
        %v375 = vadd.f32 %v359, 0.0
        %v376 = vadd.f32 %v360, 0.0
        %v377 = vadd.f32 %v369, %v373
        %v378 = vadd.f32 %v370, %v374
        %v379 = vadd.f32 %v371, %v375
        %v380 = vadd.f32 %v372, %v376
        %381 = vst [vmem:[#allocation2] sm:$0xff] %v377
        %382 = vst [vmem:[#allocation2 + $0x8] sm:$0xff] %v378
        %383 = vst [vmem:[#allocation2 + $0x10] sm:$0xff] %v379
        %384 = vst [vmem:[#allocation2 + $0x18] sm:$0xff] %v380
        %v385 = vld [vmem:[#allocation3] sm:$0xff]
        %v386 = vld [vmem:[#allocation3 + $0x8] sm:$0xff]
        %v387 = vld [vmem:[#allocation3 + $0x10] sm:$0xff]
        %v388 = vld [vmem:[#allocation3 + $0x18] sm:$0xff]
        %v389 = vadd.f32 %v365, 0.0
        %v390 = vadd.f32 %v366, 0.0
        %v391 = vadd.f32 %v367, 0.0
        %v392 = vadd.f32 %v368, 0.0
        %v393 = vadd.f32 %v385, %v389
        %v394 = vadd.f32 %v386, %v390
        %v395 = vadd.f32 %v387, %v391
        %v396 = vadd.f32 %v388, %v392
        %397 = vst [vmem:[#allocation3] sm:$0xff] %v393
        %398 = vst [vmem:[#allocation3 + $0x8] sm:$0xff] %v394
        %399 = vst [vmem:[#allocation3 + $0x10] sm:$0xff] %v395
        %400 = vst [vmem:[#allocation3 + $0x18] sm:$0xff] %v396
      $region36: #{bce_with_logits_loss.1} parent=27 // pred_fallthru
        _
      %p401 = scmp.gt.s32.totalorder %s263, 32
      // Predicated region
      $region37: #{bce_with_logits_loss.1} parent=27 // pred_check
        %p402 = pneg %p401
      $region38: #{bce_with_logits_loss.1} parent=27 // pred_check_branch
        %404 = sbr.rel (%p402) target = $region40
      $region39: #{bce_with_logits_loss.1} parent=27 // pred_region
        %v405 = vlaneseq
        %v406 = vshrl.u32 %v405, 7
        %v407 = vadd.s32 %v406, 8
        %v408 = vadd.s32 %v406, 16
        %v409 = vadd.s32 %v406, 24
        %v410 = vstv %s262
        %v411 = vadd.s32 %v410, %v406
        %v412 = vadd.s32 %v410, %v407
        %v413 = vadd.s32 %v410, %v408
        %v414 = vadd.s32 %v410, %v409
        %vm415 = vcmp.lt.s32.totalorder %v411, 32
        %vm416 = vcmp.lt.s32.totalorder %v412, 32
        %vm417 = vcmp.lt.s32.totalorder %v413, 32
        %vm418 = vcmp.lt.s32.totalorder %v414, 32
        %v419 = vld [vmem:[%s228] sm:$0xff]
        %v420 = vld [vmem:[%s228 + $0x8] sm:$0xff]
        %v421 = vld [vmem:[%s228 + $0x10] sm:$0xff]
        %v422 = vld [vmem:[%s228 + $0x18] sm:$0xff]
        %v423 = vld [vmem:[%s239] sm:$0xff]
        %v424 = vunpack.c.0.s8 %v423
        %v425 = vunpack.c.1.s8 %v423
        %v426 = vunpack.c.2.s8 %v423
        %v427 = vunpack.c.3.s8 %v423
        %v428 = vand.u32 %v424, 255
        %v429 = vand.u32 %v425, 255
        %v430 = vand.u32 %v426, 255
        %v431 = vand.u32 %v427, 255
        %v432 = vcvt.s32.f32 %v428
        %v433 = vcvt.s32.f32 %v429
        %v434 = vcvt.s32.f32 %v430
        %v435 = vcvt.s32.f32 %v431
        %vm436 = vcmp.ne.f32.partialorder %v432, 255.0
        %vm437 = vcmp.ne.f32.partialorder %v433, 255.0
        %vm438 = vcmp.ne.f32.partialorder %v434, 255.0
        %vm439 = vcmp.ne.f32.partialorder %v435, 255.0
        %vm440 = vmand %vm436, %vm415
        %vm441 = vmand %vm437, %vm416
        %vm442 = vmand %vm438, %vm417
        %vm443 = vmand %vm439, %vm418
        %v444 = vmax.f32 %v419, 0.0
        %v445 = vmax.f32 %v420, 0.0
        %v446 = vmax.f32 %v421, 0.0
        %v447 = vmax.f32 %v422, 0.0
        %v448 = vmul.f32 %v419, %v432
        %v449 = vmul.f32 %v420, %v433
        %v450 = vmul.f32 %v421, %v434
        %v451 = vmul.f32 %v422, %v435
        %v452 = vsub.f32 %v444, %v448
        %v453 = vsub.f32 %v445, %v449
        %v454 = vsub.f32 %v446, %v450
        %v455 = vsub.f32 %v447, %v451
        %v456 = vand.u32 2147483647, %v419
        %v457 = vand.u32 2147483647, %v420
        %v458 = vand.u32 2147483647, %v421
        %v459 = vand.u32 2147483647, %v422
        %v460 = vsub.f32 0.0, %v456
        %v461 = vsub.f32 0.0, %v457
        %v462 = vsub.f32 0.0, %v458
        %v463 = vsub.f32 0.0, %v459
        %v464 = vmul.f32 %v460, 1.442695
        %v465 = vpow.pop %v464
        %v466 = vmul.f32 %v461, 1.442695
        %v467 = vpow.pop %v466
        %v468 = vmul.f32 %v462, 1.442695
        %v469 = vpow.pop %v468
        %v470 = vmul.f32 %v463, 1.442695
        %v471 = vpow.pop %v470
        %v472 = vadd.f32 %v465, 1.0
        %v473 = vlog2.pop %v472
        %v474 = vmul.f32 %v473, 0.6931472
        %v475 = vmul.f32 -0.5, %v465
        %v476 = vadd.f32 %v475, 1.0
        %v477 = vmul.f32 %v476, %v465
        %v478 = vand.u32 2147483647, %v465
        %vm479 = vcmp.lt.f32.partialorder %v478, 0.0004427343
        %v480 = vsel %vm479, %v477, %v474
        %v481 = vadd.f32 %v467, 1.0
        %v482 = vlog2.pop %v481
        %v483 = vmul.f32 %v482, 0.6931472
        %v484 = vmul.f32 -0.5, %v467
        %v485 = vadd.f32 %v484, 1.0
        %v486 = vmul.f32 %v485, %v467
        %v487 = vand.u32 2147483647, %v467
        %vm488 = vcmp.lt.f32.partialorder %v487, 0.0004427343
        %v489 = vsel %vm488, %v486, %v483
        %v490 = vadd.f32 %v469, 1.0
        %v491 = vlog2.pop %v490
        %v492 = vmul.f32 %v491, 0.6931472
        %v493 = vmul.f32 -0.5, %v469
        %v494 = vadd.f32 %v493, 1.0
        %v495 = vmul.f32 %v494, %v469
        %v496 = vand.u32 2147483647, %v469
        %vm497 = vcmp.lt.f32.partialorder %v496, 0.0004427343
        %v498 = vsel %vm497, %v495, %v492
        %v499 = vadd.f32 %v471, 1.0
        %v500 = vlog2.pop %v499
        %v501 = vmul.f32 %v500, 0.6931472
        %v502 = vmul.f32 -0.5, %v471
        %v503 = vadd.f32 %v502, 1.0
        %v504 = vmul.f32 %v503, %v471
        %v505 = vand.u32 2147483647, %v471
        %vm506 = vcmp.lt.f32.partialorder %v505, 0.0004427343
        %v507 = vsel %vm506, %v504, %v501
        %v508 = vadd.f32 %v452, %v480
        %v509 = vadd.f32 %v453, %v489
        %v510 = vadd.f32 %v454, %v498
        %v511 = vadd.f32 %v455, %v507
        %v512 = vsel %vm440, %v508, 0.0
        %v513 = vsel %vm441, %v509, 0.0
        %v514 = vsel %vm442, %v510, 0.0
        %v515 = vsel %vm443, %v511, 0.0
        %v516 = vsel %vm440, 1, 0
        %v517 = vsel %vm441, 1, 0
        %v518 = vsel %vm442, 1, 0
        %v519 = vsel %vm443, 1, 0
        %v520 = vcvt.s32.f32 %v516
        %v521 = vcvt.s32.f32 %v517
        %v522 = vcvt.s32.f32 %v518
        %v523 = vcvt.s32.f32 %v519
        %v524 = vld [vmem:[#allocation2] sm:$0xff]
        %v525 = vld [vmem:[#allocation2 + $0x8] sm:$0xff]
        %v526 = vld [vmem:[#allocation2 + $0x10] sm:$0xff]
        %v527 = vld [vmem:[#allocation2 + $0x18] sm:$0xff]
        %v528 = vadd.f32 %v512, 0.0
        %v529 = vadd.f32 %v513, 0.0
        %v530 = vadd.f32 %v514, 0.0
        %v531 = vadd.f32 %v515, 0.0
        %v532 = vadd.f32 %v524, %v528
        %v533 = vadd.f32 %v525, %v529
        %v534 = vadd.f32 %v526, %v530
        %v535 = vadd.f32 %v527, %v531
        %536 = vst [vmem:[#allocation2] sm:$0xff] %v532
        %537 = vst [vmem:[#allocation2 + $0x8] sm:$0xff] %v533
        %538 = vst [vmem:[#allocation2 + $0x10] sm:$0xff] %v534
        %539 = vst [vmem:[#allocation2 + $0x18] sm:$0xff] %v535
        %v540 = vld [vmem:[#allocation3] sm:$0xff]
        %v541 = vld [vmem:[#allocation3 + $0x8] sm:$0xff]
        %v542 = vld [vmem:[#allocation3 + $0x10] sm:$0xff]
        %v543 = vld [vmem:[#allocation3 + $0x18] sm:$0xff]
        %v544 = vadd.f32 %v520, 0.0
        %v545 = vadd.f32 %v521, 0.0
        %v546 = vadd.f32 %v522, 0.0
        %v547 = vadd.f32 %v523, 0.0
        %v548 = vadd.f32 %v540, %v544
        %v549 = vadd.f32 %v541, %v545
        %v550 = vadd.f32 %v542, %v546
        %v551 = vadd.f32 %v543, %v547
        %552 = vst [vmem:[#allocation3] sm:$0xff] %v548
        %553 = vst [vmem:[#allocation3 + $0x8] sm:$0xff] %v549
        %554 = vst [vmem:[#allocation3 + $0x10] sm:$0xff] %v550
        %555 = vst [vmem:[#allocation3 + $0x18] sm:$0xff] %v551
      $region40: #{bce_with_logits_loss.1} parent=27 // pred_fallthru
        _
      // Predicated region
      $region41: #{bce_with_logits_loss.1} parent=27 // pred_check
        %p556 = pneg %p249
      $region42: #{bce_with_logits_loss.1} parent=27 // pred_check_branch
        %558 = sbr.rel (%p556) target = $region44
      $region43: #{bce_with_logits_loss.1} parent=27 // pred_region
        %v559 = vld [vmem:[#allocation2] sm:$0xff]
        %v560 = vld [vmem:[#allocation2 + $0x8] sm:$0xff]
        %v561 = vld [vmem:[#allocation2 + $0x10] sm:$0xff]
        %v562 = vld [vmem:[#allocation2 + $0x18] sm:$0xff]
        %v563 = vadd.f32 %v559, %v560
        %v564 = vadd.f32 %v563, %v561
        %v565 = vadd.f32 %v564, %v562
        %v566 = vrot.slane %v565, 4
        %v567 = vadd.f32 %v565, %v566
        %v568 = vrot.slane %v567, 2
        %v569 = vadd.f32 %v567, %v568
        %v570 = vrot.slane %v569, 1
        %v571 = vadd.f32 %v569, %v570
        %572 = vst [vmem:[%s245] sm:$0x1] %v571
        %v573 = vld [vmem:[#allocation3] sm:$0xff]
        %v574 = vld [vmem:[#allocation3 + $0x8] sm:$0xff]
        %v575 = vld [vmem:[#allocation3 + $0x10] sm:$0xff]
        %v576 = vld [vmem:[#allocation3 + $0x18] sm:$0xff]
        %v577 = vadd.f32 %v573, %v574
        %v578 = vadd.f32 %v577, %v575
        %v579 = vadd.f32 %v578, %v576
        %v580 = vrot.slane %v579, 4
        %v581 = vadd.f32 %v579, %v580
        %v582 = vrot.slane %v581, 2
        %v583 = vadd.f32 %v581, %v582
        %v584 = vrot.slane %v583, 1
        %v585 = vadd.f32 %v583, %v584
        %586 = vst [vmem:[%s248] sm:$0x1] %v585
      $region44: #{bce_with_logits_loss.1} parent=27 // pred_fallthru
        _
      %p587 = scmp.lt.s32.totalorder %s19, 1
      %s588 = scalar_select %p587, %s19, 1
      %s589 = scalar_lea.vmem %s2, %s588
      %p590 = scmp.lt.s32.totalorder %s19, 1
      %s591 = scalar_select %p590, %s19, 1
      %s592 = scalar_lea.vmem %s3, %s591
      // Predicated region
      $region45: #{bce_with_logits_loss.1} parent=27 // pred_check
        %p593 = pneg %p109
      $region46: #{bce_with_logits_loss.1} parent=27 // pred_check_branch
        %595 = sbr.rel (%p593) target = $region48
      $region47: #{bce_with_logits_loss.1} parent=27 // pred_region
        _
      $region48: #{bce_with_logits_loss.1} parent=27 // pred_fallthru
        _
      // Predicated region
      $region49: #{bce_with_logits_loss.1} parent=27 // pred_check
        %p596 = pneg %p135
      $region50: #{bce_with_logits_loss.1} parent=27 // pred_check_branch
        %598 = sbr.rel (%p596) target = $region52
      $region51: #{bce_with_logits_loss.1} parent=27 // pred_region
        _
      $region52: #{bce_with_logits_loss.1} parent=27 // pred_fallthru
        _
    $region28: #{bce_with_logits_loss.1} parent=5 // pred_fallthru
      _
    %p599 = scmp.le.s32.totalorder 2, %s10
    // Predicated region
    $region53: #{bce_with_logits_loss.1} parent=5 // pred_check
      %p600 = pneg %p599
    $region54: #{bce_with_logits_loss.1} parent=5 // pred_check_branch
      %602 = sbr.rel (%p600) target = $region56
    $region55: #{bce_with_logits_loss.1} parent=5 // pred_region
      %s603 = ssub.s32 %s10, 2
      // Predicated region
      $region57: #{bce_with_logits_loss.1} parent=55 // pred_check
        %p604 = pneg %p115
      $region58: #{bce_with_logits_loss.1} parent=55 // pred_check_branch
        %606 = sbr.rel (%p604) target = $region60
      $region59: #{bce_with_logits_loss.1} parent=55 // pred_region
        %p607 = scmp.lt.s32.totalorder %s21, 1
        %s608 = scalar_select %p607, %s21, 1
        %s609 = scalar_lea.vmem %s2, %s608
      $region60: #{bce_with_logits_loss.1} parent=55 // pred_fallthru
        _
      // Predicated region
      $region61: #{bce_with_logits_loss.1} parent=55 // pred_check
        %p610 = pneg %p141
      $region62: #{bce_with_logits_loss.1} parent=55 // pred_check_branch
        %612 = sbr.rel (%p610) target = $region64
      $region63: #{bce_with_logits_loss.1} parent=55 // pred_region
        %p613 = scmp.lt.s32.totalorder %s21, 1
        %s614 = scalar_select %p613, %s21, 1
        %s615 = scalar_lea.vmem %s3, %s614
      $region64: #{bce_with_logits_loss.1} parent=55 // pred_fallthru
        _
    $region56: #{bce_with_logits_loss.1} parent=5 // pred_fallthru
      _
  $region6: #{bce_with_logits_loss.1} parent=0 // loop_footer
    %s14 = sadd.s32 1, %s10
  $region7: #{bce_with_logits_loss.1} parent=0 // loop_footer_branch
    %9 = sbr.rel target = $region3
  $region8: #{bce_with_logits_loss.1} parent=0 // loop_exit
    _

</llo_original>
